<compile_context>
chip_gen: v6e
topology: v6e:2x2x1
jax: 0.10.0
libtpu: 0.0.40
codegen_flags: <defaults>
</compile_context>

<pallas_src>
import functools

import jax
import jax.numpy as jnp
from jax import lax
from jax.experimental import pallas as pl
from jax.experimental.pallas import tpu as pltpu


def _rmsnorm_kernel(x_ref, w_ref, o_ref, *, eps):
    """x_ref: (TN, D) in_dtype, w_ref: (1, D), o_ref: (TN, D) in_dtype."""
    # Pass 1: per-row mean of squares; only the (TN, 1) f32 statistic stays
    # live past this point (the full f32 upcast is not carried forward).
    xf = x_ref[...].astype(jnp.float32)                    # (TN, D) f32
    ms = jnp.mean(xf * xf, axis=-1, keepdims=True)         # (TN, 1)
    inv = lax.rsqrt(ms + eps)                               # EUP rsqrt (free slot)
    # Pass 2: re-read / re-cast the resident block for normalize + scale.
    w = w_ref[...].astype(jnp.float32)                      # (1, D)
    o_ref[...] = (x_ref[...].astype(jnp.float32) * inv * w).astype(o_ref.dtype)


# Design budget for in-kernel VMEM (double-buffered in+out blocks + f32 temps).
# Kept <= ~32 MiB so the kernel fits v7x's 64 MiB VMEM per TensorCore with
# double-buffering intact; v5e/v6e (128 MiB) have even more headroom.
_VMEM_TILE_BUDGET = 32 * 1024 * 1024
_VMEM_LIMIT_BYTES = 56 * 1024 * 1024  # <= v7x physical (64 MiB); > v5e/v6e defaults
_MAX_TILE_ROWS = 4096                  # amortization cap for tiny d_model


@functools.partial(jax.jit, static_argnames=("eps",))
def rmsnorm_forward(x, weight, *, eps=1e-5):
    """Pallas equivalent of RMSNorm.forward.

    x:      (batch, ..., d_model), any float dtype
    weight: (d_model,)
    returns same shape/dtype as x
    """
    orig_shape = x.shape
    d_model = orig_shape[-1]
    n = 1
    for s in orig_shape[:-1]:
        n *= s

    x2d = x.reshape(n, d_model)
    w2d = weight.reshape(1, d_model)

    itemsize = jnp.dtype(x.dtype).itemsize
    # Sublane pack: 8 rows for 32-bit, 16 for bf16/fp16, 32 for int8/fp8.
    pack = max(8, 32 // itemsize)

    # Adaptive token tile: per-row VMEM cost ~= 2 double-buffered input rows +
    # 2 double-buffered output rows (in_dtype) + ~2 f32-wide temporaries.
    bytes_per_row = d_model * (4 * itemsize + 2 * 4)
    tile = min(_VMEM_TILE_BUDGET // bytes_per_row, _MAX_TILE_ROWS)
    tile = max(pack, (tile // pack) * pack)
    if n >= pack:
        # Never let the block exceed the array (standard ragged-last-block path).
        tile = min(tile, (n // pack) * pack)
    else:
        # Tiny input: a block equal to the full (unpadded) row extent is legal.
        tile = n

    grid = pl.cdiv(n, tile)

    out = pl.pallas_call(
        functools.partial(_rmsnorm_kernel, eps=float(eps)),
        out_shape=jax.ShapeDtypeStruct((n, d_model), x.dtype),
        grid_spec=pltpu.PrefetchScalarGridSpec(
            num_scalar_prefetch=0,
            grid=(grid,),
            in_specs=[
                pl.BlockSpec((tile, d_model), lambda i: (i, 0)),  # x rows
                pl.BlockSpec((1, d_model), lambda i: (0, 0)),     # weight (resident)
            ],
            out_specs=pl.BlockSpec((tile, d_model), lambda i: (i, 0)),
        ),
        compiler_params=pltpu.CompilerParams(
            dimension_semantics=("parallel",),   # megacore / 2-TC sharding on v7x
            vmem_limit_bytes=_VMEM_LIMIT_BYTES,
        ),
    )(x2d, w2d)

    return out.reshape(orig_shape)


def _rmsnorm_ref(x, weight, eps=1e-5):
    xf = x.astype(jnp.float32)
    rms = jnp.sqrt(jnp.mean(xf * xf, axis=-1, keepdims=True) + eps)
    return (xf / rms * weight.astype(jnp.float32)).astype(x.dtype)


if __name__ == "__main__":
    batch, seq_len, d_model = 2, 8, 32
    eps = 1e-5

    key = jax.random.PRNGKey(0)
    k_x, k_w = jax.random.split(key)

    x = jax.random.normal(k_x, (batch, seq_len, d_model), dtype=jnp.float32)
    # Module initializes weight to ones; use a random weight so the test is
    # non-trivial (semantics identical to a trained parameter).
    weight = 1.0 + 0.1 * jax.random.normal(k_w, (d_model,), dtype=jnp.float32)

    # f32 path
    out = jax.block_until_ready(rmsnorm_forward(x, weight, eps=eps))
    ref = _rmsnorm_ref(x, weight, eps=eps)
    assert out.shape == x.shape
    assert out.dtype == x.dtype
    assert jnp.allclose(out, ref, atol=1e-5, rtol=1e-5), "f32 mismatch vs reference"

    # bf16 input: verify the f32-compute / cast-back path matches the module.
    x_bf16 = x.astype(jnp.bfloat16)
    out_bf16 = jax.block_until_ready(rmsnorm_forward(x_bf16, weight, eps=eps))
    ref_bf16 = _rmsnorm_ref(x_bf16, weight, eps=eps)
    assert out_bf16.dtype == jnp.bfloat16
    assert jnp.allclose(
        out_bf16.astype(jnp.float32), ref_bf16.astype(jnp.float32), atol=2e-2
    ), "bf16 mismatch vs reference"

    # Ragged token count (n not a multiple of the tile): exercises the masked
    # partial-last-block path that replaced the wrapper-side pad/slice.
    x_ragged = jax.random.normal(k_x, (3, 3, d_model), dtype=jnp.float32)
    out_r = jax.block_until_ready(rmsnorm_forward(x_ragged, weight, eps=eps))
    ref_r = _rmsnorm_ref(x_ragged, weight, eps=eps)
    assert out_r.shape == x_ragged.shape
    assert jnp.allclose(out_r, ref_r, atol=1e-5, rtol=1e-5), "ragged mismatch"

    print("KERNEL_OK")
</pallas_src>

<mosaic_0001>
module attributes {stable_mosaic.version = 11 : i64} {
  func.func @_rmsnorm_kernel(%arg0: i32, %arg1: memref<16x32xf32, #tpu.memory_space<vmem>>, %arg2: memref<1x32xf32, #tpu.memory_space<vmem>>, %arg3: memref<16x32xf32, #tpu.memory_space<vmem>>) attributes {dimension_semantics = [#tpu.dimension_semantics<parallel>], iteration_bounds = array<i64: 1>, scalar_prefetch = 0 : i64, scratch_operands = 0 : i64, tpu.core_type = #tpu.core_type<tc>, window_params = [{transform_indices = @transform_0, window_bounds = array<i64: 16, 32>}, {pipeline_mode = #tpu.pipeline_mode<synchronous>, transform_indices = @transform_1, window_bounds = array<i64: 1, 32>}, {transform_indices = @transform_2, window_bounds = array<i64: 16, 32>}]} {
    %c0 = arith.constant 0 : index
    %c0_0 = arith.constant 0 : index
    %0 = vector.load %arg1[%c0, %c0_0] : memref<16x32xf32, #tpu.memory_space<vmem>>, vector<16x32xf32>
    %1 = arith.mulf %0, %0 : vector<16x32xf32>
    %cst = arith.constant dense<0.000000e+00> : vector<16xf32>
    %2 = vector.multi_reduction <add>, %1, %cst [1] : vector<16x32xf32> to vector<16xf32>
    %3 = vector.shape_cast %2 : vector<16xf32> to vector<16x1xf32>
    %cst_1 = arith.constant 3.200000e+01 : f32
    %4 = vector.broadcast %cst_1 : f32 to vector<16x1xf32>
    %5 = arith.divf %3, %4 : vector<16x1xf32>
    %cst_2 = arith.constant 9.99999974E-6 : f32
    %6 = vector.broadcast %cst_2 : f32 to vector<16x1xf32>
    %7 = arith.addf %5, %6 : vector<16x1xf32>
    %8 = math.rsqrt %7 : vector<16x1xf32>
    %c0_3 = arith.constant 0 : index
    %c0_4 = arith.constant 0 : index
    %9 = vector.load %arg2[%c0_3, %c0_4] : memref<1x32xf32, #tpu.memory_space<vmem>>, vector<1x32xf32>
    %c0_5 = arith.constant 0 : index
    %c0_6 = arith.constant 0 : index
    %10 = vector.load %arg1[%c0_5, %c0_6] : memref<16x32xf32, #tpu.memory_space<vmem>>, vector<16x32xf32>
    %11 = vector.broadcast %8 : vector<16x1xf32> to vector<16x32xf32>
    %12 = arith.mulf %10, %11 : vector<16x32xf32>
    %13 = vector.broadcast %9 : vector<1x32xf32> to vector<16x32xf32>
    %14 = arith.mulf %12, %13 : vector<16x32xf32>
    %c0_7 = arith.constant 0 : index
    %c0_8 = arith.constant 0 : index
    %15 = vector.load %arg3[%c0_7, %c0_8] : memref<16x32xf32, #tpu.memory_space<vmem>>, vector<16x32xf32>
    tpu.vector_store %arg3[%c0_7, %c0_8], %14 {strides = array<i32>} : memref<16x32xf32, #tpu.memory_space<vmem>>, vector<16x32xf32>,
    return
  }
  func.func @transform_0(%arg0: i32) -> (i32, i32) {
    %c0_i32 = arith.constant 0 : i32
    %c0_i32_0 = arith.constant 0 : i32
    return %arg0, %c0_i32 : i32, i32
  }
  func.func @transform_1(%arg0: i32) -> (i32, i32) {
    %c0_i32 = arith.constant 0 : i32
    %c0_i32_0 = arith.constant 0 : i32
    %c0_i32_1 = arith.constant 0 : i32
    return %c0_i32, %c0_i32_0 : i32, i32
  }
  func.func @transform_2(%arg0: i32) -> (i32, i32) {
    %c0_i32 = arith.constant 0 : i32
    %c0_i32_0 = arith.constant 0 : i32
    return %arg0, %c0_i32 : i32, i32
  }
}

</mosaic_0001>

<llo_original>
// kernel: rmsnorm_forward.1
$region0: #{rmsnorm_forward.1}
  #allocation0 [shape = 'u32[]', space=smem, size = 0x4, offset = 0x4, fixed_abs, tag = 'smem constant byte address 0x4 - core index']
  #allocation1 [shape = 'u32[144,128]{1,0:T(1,128)}', space=vmem, size = 0x12000, scoped, tag = 'internal scratch']
  %s0 = inlined_call_operand.hbm [shape: f32[16,32], index: 0, kind: input, shape index: {}]
  %s1 = inlined_call_operand.vmem [shape: f32[1,32], index: 1, kind: input, shape index: {}]
  %s2 = inlined_call_operand.hbm [shape: f32[16,32], index: 2, kind: output, shape index: {}]
  %s3 = sld [smem:[#allocation0]]
  $region22: #{rmsnorm_forward.1} parent=0
    _
  %s5 = ssub.s32 1, %s3
  %s6 = scalar_select 0, %s5, %s3
  $region1: #{rmsnorm_forward.1} parent=0
    #allocation2 [shape = 'u8[8192]{0}', space=vmem, size = 0x2000, scoped, tag = 'input window, operand 0, single buffered']
    #allocation3 [shape = 's32[1]{0}', space=sflag, size = 0x4, scoped, tag = 'scoped memory for rmsnorm_forward.1']
    #allocation4 [shape = 's32[1]{0}', space=sflag, size = 0x4, scoped, tag = 'scoped memory for rmsnorm_forward.1']
    #allocation5 [shape = 'u8[8192]{0}', space=vmem, size = 0x2000, scoped, tag = 'output window, operand 0, single buffered']
    %7 = vsyncpa [#allocation3], 0
    %8 = vsyncpa [#allocation4], 0
    // Predicated region
    $region2: #{rmsnorm_forward.1} parent=1 // pred_check
      _
    $region3: #{rmsnorm_forward.1} parent=1 // pred_check_branch
      %10 = sbr.rel (0) target = $region5
    $region4: #{rmsnorm_forward.1} parent=1 // pred_region
      %s12 = ssub.s32 256, 256
      %13 = vsyncadd [#allocation3], %s12
      %s14 = sshll.u32 [#allocation2], 4
      %s15 = int_to_ptr.vmem [resolvable:$true] %s14
      %20 = dma.hbm_to_vmem [thread:$0]  %s0, 256, %s15, [#allocation3], 128, 128, 8
    $region5: #{rmsnorm_forward.1} parent=1 // pred_fallthru
      _
    // Predicated region
    $region6: #{rmsnorm_forward.1} parent=1 // pred_check
      _
    $region7: #{rmsnorm_forward.1} parent=1 // pred_check_branch
      %22 = sbr.rel (0) target = $region9
    $region8: #{rmsnorm_forward.1} parent=1 // pred_region
      _
    $region9: #{rmsnorm_forward.1} parent=1 // pred_fallthru
      _
    // Predicated region
    $region10: #{rmsnorm_forward.1} parent=1 // pred_check
      _
    $region11: #{rmsnorm_forward.1} parent=1 // pred_check_branch
      %24 = sbr.rel (0) target = $region13
    $region12: #{rmsnorm_forward.1} parent=1 // pred_region
      %25 = dma.done [#allocation3], 256
    $region13: #{rmsnorm_forward.1} parent=1 // pred_fallthru
      _
    %v26 = vld [vmem:[#allocation2] sm:$0xff]
    %v27 = vld [vmem:[#allocation2 + $0x8] sm:$0xff]
    %v28 = vmul.f32 %v26, %v26
    %v29 = vmul.f32 %v27, %v27
    %vm30 = vcmask 261120
    %v31 = vsel %vm30, %v28, 0.0
    %32 = vadd.xlane.f32.xlu0 %v31
    %v33 = vpop.xlane.xlu0 %32
    %v34 = vsel %vm30, %v29, 0.0
    %35 = vadd.xlane.f32.xlu0 %v34
    %v36 = vpop.xlane.xlu0 %35
    %v37 = vrcp.pop 32.0
    %v38 = vmul.f32 %v33, %v37
    %v39 = vmul.f32 %v36, %v37
    %v40 = vadd.f32 %v38, 1e-05
    %v41 = vadd.f32 %v39, 1e-05
    %v42 = vrsqrt.pop %v40
    %v43 = vrsqrt.pop %v41
    %v44 = vld [vmem:[%s1] sm:$0x1]
    %v45 = vmul.f32 %v26, %v42
    %v46 = vmul.f32 %v27, %v43
    %v48 = vlaneseq
    %v49 = vshrl.u32 %v48, 7
    %v50 = vsub.s32 0, %v49
    %v51 = vrot.slane %v44, %v50
    %v53 = vmul.f32 %v45, %v51
    %v54 = vmul.f32 %v46, %v51
    %55 = vst.msk [vmem:[#allocation5] sm:$0xff] %vm30, %v53
    %56 = vst.msk [vmem:[#allocation5 + $0x8] sm:$0xff] %vm30, %v54
    // Predicated region
    $region14: #{rmsnorm_forward.1} parent=1 // pred_check
      _
    $region15: #{rmsnorm_forward.1} parent=1 // pred_check_branch
      %58 = sbr.rel (0) target = $region17
    $region16: #{rmsnorm_forward.1} parent=1 // pred_region
      %s60 = ssub.s32 256, 256
      %61 = vsyncadd [#allocation4], %s60
      %s62 = sshll.u32 [#allocation5], 4
      %s63 = int_to_ptr.vmem [resolvable:$true] %s62
      %68 = dma.vmem_to_hbm [thread:$0]  %s63, 256, %s2, [#allocation4], 128, 128, 8
    $region17: #{rmsnorm_forward.1} parent=1 // pred_fallthru
      _
    // Predicated region
    $region18: #{rmsnorm_forward.1} parent=1 // pred_check
      _
    $region19: #{rmsnorm_forward.1} parent=1 // pred_check_branch
      %70 = sbr.rel (0) target = $region21
    $region20: #{rmsnorm_forward.1} parent=1 // pred_region
      %71 = dma.done [#allocation4], 256
    $region21: #{rmsnorm_forward.1} parent=1 // pred_fallthru
      _
    %72 = vsyncpa [#allocation3], 1
    %73 = vsyncpa [#allocation4], 1

</llo_original>
